<compile_context>
chip_gen: v6e
topology: v6e:2x2x1
jax: 0.10.0
libtpu: 0.0.40
codegen_flags: <defaults>
</compile_context>

<pallas_src>
import jax
import jax.numpy as jnp
from jax.experimental import pallas as pl
from jax.experimental.pallas import tpu as pltpu


# ---------------------------------------------------------------------------
# Pallas kernel: one grid step == one *group* of MC samples (unrolled).
# ---------------------------------------------------------------------------
def _vogn_forward_kernel(
    x_ref,        # [B, D_in]
    w1t_ref,      # [D_in, H]      (w1 pre-transposed)
    b1_ref,       # [1, H]
    std1w_ref,    # [D_in, H]      (hoisted std for w1, pre-transposed)
    std1b_ref,    # [1, H]
    w2t_ref,      # [H, D_out]
    b2_ref,       # [1, D_out]
    std2w_ref,    # [H, D_out]
    std2b_ref,    # [1, D_out]
    e1w_ref,      # [SG, D_in, H]  this group's eps draws (pre-transposed)
    e1b_ref,      # [SG, 1, H]
    e2w_ref,      # [SG, H, D_out]
    e2b_ref,      # [SG, 1, D_out]
    out_ref,      # [SG, B, D_out]
):
    sg = e1w_ref.shape[0]          # static (block shape)

    # Sample-invariant operands: load once, reuse across the unrolled loop.
    x = x_ref[...]
    w1t, s1w = w1t_ref[...], std1w_ref[...]
    b1, s1b = b1_ref[...], std1b_ref[...]
    w2t, s2w = w2t_ref[...], std2w_ref[...]
    b2, s2b = b2_ref[...], std2b_ref[...]

    # Short, fixed trip-count -> static unroll (LLO scheduler visibility).
    for s in range(sg):
        # vogn_prepare: p_tilde = p + eps * std   (std precomputed in wrapper)
        w1p = w1t + e1w_ref[s] * s1w            # [D_in, H]
        b1p = b1 + e1b_ref[s] * s1b             # [1, H]
        w2p = w2t + e2w_ref[s] * s2w            # [H, D_out]
        b2p = b2 + e2b_ref[s] * s2b             # [1, D_out]

        # Model forward: Linear -> ReLU -> Linear (no transposes needed).
        h = jnp.dot(x, w1p, preferred_element_type=jnp.float32) + b1p
        h = jnp.maximum(h, 0.0)
        y = jnp.dot(h, w2p, preferred_element_type=jnp.float32) + b2p
        out_ref[s] = y.astype(out_ref.dtype)


# ---------------------------------------------------------------------------
# Wrapper: hoists std, pre-transposes layouts, builds the (small) grid.
# ---------------------------------------------------------------------------
def vogn_forward(x, params, scales, eps, *, N, damping=0.0):
    """x: [B, D_in]; params/scales: dicts of w1,b1,w2,b2 (PyTorch layout
    w: [out, in], b: [1, out]); eps: per-sample draws in the same layout with a
    leading `samples` axis.  Returns [samples, B, D_out]."""
    w1, b1, w2, b2 = params["w1"], params["b1"], params["w2"], params["b2"]

    samples = eps["w1"].shape[0]
    B, D_in = x.shape
    H = w1.shape[0]
    D_out = w2.shape[0]

    # ---- hoisted, sample-invariant std (exactly the reference formula) -----
    def std(sc):
        return jnp.sqrt(1.0 / (sc + damping) / N)

    # ---- one-time layout plumbing (plain XLA): pre-transpose so the kernel
    #      perturbs tensors already in matmul layout --------------------------
    w1t, std1w = w1.T, std(scales["w1"]).T                  # [D_in, H]
    w2t, std2w = w2.T, std(scales["w2"]).T                  # [H, D_out]
    std1b = std(scales["b1"])                               # [1, H]
    std2b = std(scales["b2"])                               # [1, D_out]
    e1w = jnp.transpose(eps["w1"], (0, 2, 1))               # [S, D_in, H]
    e2w = jnp.transpose(eps["w2"], (0, 2, 1))               # [S, H, D_out]
    e1b = eps["b1"]                                         # [S, 1, H]
    e2b = eps["b2"]                                         # [S, 1, D_out]

    # ---- grid: 2 sample-groups (parallel) so v7x's 2 TCs split the draws;
    #      each group handles samples//groups draws inside one invocation -----
    groups = 2 if (samples > 1 and samples % 2 == 0) else 1
    sg = samples // groups

    def fixed(shape):
        return pl.BlockSpec(shape, lambda g, _n=len(shape): (0,) * _n)

    def per_group(shape):
        return pl.BlockSpec((sg,) + shape,
                            lambda g, _n=len(shape): (g,) + (0,) * _n)

    out = pl.pallas_call(
        _vogn_forward_kernel,
        out_shape=jax.ShapeDtypeStruct((samples, B, D_out), x.dtype),
        grid_spec=pltpu.PrefetchScalarGridSpec(
            num_scalar_prefetch=0,
            grid=(groups,),
            in_specs=[
                fixed((B, D_in)),           # x
                fixed((D_in, H)),           # w1ᵀ
                fixed((1, H)),              # b1
                fixed((D_in, H)),           # std(w1)ᵀ
                fixed((1, H)),              # std(b1)
                fixed((H, D_out)),          # w2ᵀ
                fixed((1, D_out)),          # b2
                fixed((H, D_out)),          # std(w2)ᵀ
                fixed((1, D_out)),          # std(b2)
                per_group((D_in, H)),       # eps w1ᵀ
                per_group((1, H)),          # eps b1
                per_group((H, D_out)),      # eps w2ᵀ
                per_group((1, D_out)),      # eps b2
            ],
            out_specs=pl.BlockSpec((sg, B, D_out), lambda g: (g, 0, 0)),
        ),
        compiler_params=pltpu.CompilerParams(
            dimension_semantics=("parallel",)),
    )(x, w1t, b1, std1w, std1b, w2t, b2, std2w, std2b, e1w, e1b, e2w, e2b)
    return out


# ---------------------------------------------------------------------------
# Pure-JAX reference (mirrors vogn_prepare + MLP forward) for a sanity check.
# ---------------------------------------------------------------------------
def vogn_forward_ref(x, params, scales, eps, *, N, damping=0.0):
    def one(s):
        std = lambda sc: jnp.sqrt(1.0 / (sc + damping) / N)
        w1 = params["w1"] + eps["w1"][s] * std(scales["w1"])
        b1 = params["b1"] + eps["b1"][s] * std(scales["b1"])
        w2 = params["w2"] + eps["w2"][s] * std(scales["w2"])
        b2 = params["b2"] + eps["b2"][s] * std(scales["b2"])
        h = jnp.maximum(x @ w1.T + b1, 0.0)
        return h @ w2.T + b2
    return jnp.stack([one(s) for s in range(eps["w1"].shape[0])], axis=0)


if __name__ == "__main__":
    # Small shapes implied by an MLP VOGN model: layers = [32, 32, 8].
    samples, B, D_in, H, D_out = 4, 8, 32, 32, 8
    N = 1024.0        # dataset size (len(loader) * batch_size * augmentation)
    damping = 0.0

    key = jax.random.PRNGKey(0)
    ks = jax.random.split(key, 12)

    params = {
        "w1": jax.random.normal(ks[0], (H, D_in), jnp.float32) * 0.1,
        "b1": jax.random.normal(ks[1], (1, H), jnp.float32) * 0.1,
        "w2": jax.random.normal(ks[2], (D_out, H), jnp.float32) * 0.1,
        "b2": jax.random.normal(ks[3], (1, D_out), jnp.float32) * 0.1,
    }
    # Posterior scales (as produced by the first vogn_step): strictly positive.
    scales = {
        "w1": jnp.abs(jax.random.normal(ks[4], (H, D_in), jnp.float32)) + 0.5,
        "b1": jnp.abs(jax.random.normal(ks[5], (1, H), jnp.float32)) + 0.5,
        "w2": jnp.abs(jax.random.normal(ks[6], (D_out, H), jnp.float32)) + 0.5,
        "b2": jnp.abs(jax.random.normal(ks[7], (1, D_out), jnp.float32)) + 0.5,
    }
    # Per-MC-sample standard-normal draws (deterministic stand-in for
    # torch.randn_like under vmap(randomness='different')).
    eps = {
        "w1": jax.random.normal(ks[8], (samples, H, D_in), jnp.float32),
        "b1": jax.random.normal(ks[9], (samples, 1, H), jnp.float32),
        "w2": jax.random.normal(ks[10], (samples, D_out, H), jnp.float32),
        "b2": jax.random.normal(ks[11], (samples, 1, D_out), jnp.float32),
    }

    x = jax.random.normal(jax.random.PRNGKey(42), (B, D_in), jnp.float32)

    out = vogn_forward(x, params, scales, eps, N=N, damping=damping)
    out = jax.block_until_ready(out)

    ref = vogn_forward_ref(x, params, scales, eps, N=N, damping=damping)
    assert out.shape == (samples, B, D_out)
    assert jnp.allclose(out, ref, atol=1e-5, rtol=1e-5)

    print("KERNEL_OK")
</pallas_src>

<mosaic_0001>
module attributes {stable_mosaic.version = 11 : i64} {
  func.func @_vogn_forward_kernel(%arg0: i32, %arg1: memref<8x32xf32, #tpu.memory_space<vmem>>, %arg2: memref<32x32xf32, #tpu.memory_space<vmem>>, %arg3: memref<1x32xf32, #tpu.memory_space<vmem>>, %arg4: memref<32x32xf32, #tpu.memory_space<vmem>>, %arg5: memref<1x32xf32, #tpu.memory_space<vmem>>, %arg6: memref<32x8xf32, #tpu.memory_space<vmem>>, %arg7: memref<1x8xf32, #tpu.memory_space<vmem>>, %arg8: memref<32x8xf32, #tpu.memory_space<vmem>>, %arg9: memref<1x8xf32, #tpu.memory_space<vmem>>, %arg10: memref<2x32x32xf32, #tpu.memory_space<vmem>>, %arg11: memref<2x1x32xf32, #tpu.memory_space<vmem>>, %arg12: memref<2x32x8xf32, #tpu.memory_space<vmem>>, %arg13: memref<2x1x8xf32, #tpu.memory_space<vmem>>, %arg14: memref<2x8x8xf32, #tpu.memory_space<vmem>>) attributes {dimension_semantics = [#tpu.dimension_semantics<parallel>], iteration_bounds = array<i64: 2>, scalar_prefetch = 0 : i64, scratch_operands = 0 : i64, tpu.core_type = #tpu.core_type<tc>, window_params = [{pipeline_mode = #tpu.pipeline_mode<synchronous>, transform_indices = @transform_0, window_bounds = array<i64: 8, 32>}, {pipeline_mode = #tpu.pipeline_mode<synchronous>, transform_indices = @transform_1, window_bounds = array<i64: 32, 32>}, {pipeline_mode = #tpu.pipeline_mode<synchronous>, transform_indices = @transform_2, window_bounds = array<i64: 1, 32>}, {pipeline_mode = #tpu.pipeline_mode<synchronous>, transform_indices = @transform_3, window_bounds = array<i64: 32, 32>}, {pipeline_mode = #tpu.pipeline_mode<synchronous>, transform_indices = @transform_4, window_bounds = array<i64: 1, 32>}, {pipeline_mode = #tpu.pipeline_mode<synchronous>, transform_indices = @transform_5, window_bounds = array<i64: 32, 8>}, {pipeline_mode = #tpu.pipeline_mode<synchronous>, transform_indices = @transform_6, window_bounds = array<i64: 1, 8>}, {pipeline_mode = #tpu.pipeline_mode<synchronous>, transform_indices = @transform_7, window_bounds = array<i64: 32, 8>}, {pipeline_mode = #tpu.pipeline_mode<synchronous>, transform_indices = @transform_8, window_bounds = array<i64: 1, 8>}, {transform_indices = @transform_9, window_bounds = array<i64: 2, 32, 32>}, {transform_indices = @transform_10, window_bounds = array<i64: 2, 1, 32>}, {transform_indices = @transform_11, window_bounds = array<i64: 2, 32, 8>}, {transform_indices = @transform_12, window_bounds = array<i64: 2, 1, 8>}, {transform_indices = @transform_13, window_bounds = array<i64: 2, 8, 8>}]} {
    %c0 = arith.constant 0 : index
    %c0_0 = arith.constant 0 : index
    %0 = vector.load %arg1[%c0, %c0_0] : memref<8x32xf32, #tpu.memory_space<vmem>>, vector<8x32xf32>
    %c0_1 = arith.constant 0 : index
    %c0_2 = arith.constant 0 : index
    %1 = vector.load %arg2[%c0_1, %c0_2] : memref<32x32xf32, #tpu.memory_space<vmem>>, vector<32x32xf32>
    %c0_3 = arith.constant 0 : index
    %c0_4 = arith.constant 0 : index
    %2 = vector.load %arg4[%c0_3, %c0_4] : memref<32x32xf32, #tpu.memory_space<vmem>>, vector<32x32xf32>
    %c0_5 = arith.constant 0 : index
    %c0_6 = arith.constant 0 : index
    %3 = vector.load %arg3[%c0_5, %c0_6] : memref<1x32xf32, #tpu.memory_space<vmem>>, vector<1x32xf32>
    %c0_7 = arith.constant 0 : index
    %c0_8 = arith.constant 0 : index
    %4 = vector.load %arg5[%c0_7, %c0_8] : memref<1x32xf32, #tpu.memory_space<vmem>>, vector<1x32xf32>
    %c0_9 = arith.constant 0 : index
    %c0_10 = arith.constant 0 : index
    %5 = vector.load %arg6[%c0_9, %c0_10] : memref<32x8xf32, #tpu.memory_space<vmem>>, vector<32x8xf32>
    %c0_11 = arith.constant 0 : index
    %c0_12 = arith.constant 0 : index
    %6 = vector.load %arg8[%c0_11, %c0_12] : memref<32x8xf32, #tpu.memory_space<vmem>>, vector<32x8xf32>
    %c0_13 = arith.constant 0 : index
    %c0_14 = arith.constant 0 : index
    %7 = vector.load %arg7[%c0_13, %c0_14] : memref<1x8xf32, #tpu.memory_space<vmem>>, vector<1x8xf32>
    %c0_15 = arith.constant 0 : index
    %c0_16 = arith.constant 0 : index
    %8 = vector.load %arg9[%c0_15, %c0_16] : memref<1x8xf32, #tpu.memory_space<vmem>>, vector<1x8xf32>
    %c0_17 = arith.constant 0 : index
    %c0_18 = arith.constant 0 : index
    %c0_19 = arith.constant 0 : index
    %9 = vector.load %arg10[%c0_17, %c0_18, %c0_19] : memref<2x32x32xf32, #tpu.memory_space<vmem>>, vector<1x32x32xf32>
    %10 = vector.shape_cast %9 : vector<1x32x32xf32> to vector<32x32xf32>
    %11 = arith.mulf %10, %2 : vector<32x32xf32>
    %12 = arith.addf %1, %11 : vector<32x32xf32>
    %c0_20 = arith.constant 0 : index
    %c0_21 = arith.constant 0 : index
    %c0_22 = arith.constant 0 : index
    %13 = vector.load %arg11[%c0_20, %c0_21, %c0_22] : memref<2x1x32xf32, #tpu.memory_space<vmem>>, vector<1x1x32xf32>
    %14 = vector.shape_cast %13 : vector<1x1x32xf32> to vector<1x32xf32>
    %15 = arith.mulf %14, %4 : vector<1x32xf32>
    %16 = arith.addf %3, %15 : vector<1x32xf32>
    %c0_23 = arith.constant 0 : index
    %c0_24 = arith.constant 0 : index
    %c0_25 = arith.constant 0 : index
    %17 = vector.load %arg12[%c0_23, %c0_24, %c0_25] : memref<2x32x8xf32, #tpu.memory_space<vmem>>, vector<1x32x8xf32>
    %18 = vector.shape_cast %17 : vector<1x32x8xf32> to vector<32x8xf32>
    %19 = arith.mulf %18, %6 : vector<32x8xf32>
    %20 = arith.addf %5, %19 : vector<32x8xf32>
    %c0_26 = arith.constant 0 : index
    %c0_27 = arith.constant 0 : index
    %c0_28 = arith.constant 0 : index
    %21 = vector.load %arg13[%c0_26, %c0_27, %c0_28] : memref<2x1x8xf32, #tpu.memory_space<vmem>>, vector<1x1x8xf32>
    %22 = vector.shape_cast %21 : vector<1x1x8xf32> to vector<1x8xf32>
    %23 = arith.mulf %22, %8 : vector<1x8xf32>
    %24 = arith.addf %7, %23 : vector<1x8xf32>
    %cst = arith.constant dense<0.000000e+00> : vector<8x32xf32>
    %25 = tpu.matmul %0, %12, %cst {dimension_numbers = #tpu.dot_dimension_numbers<[1], [0], [0], [1], [0, 0, 1, 1], [], []>} : vector<8x32xf32>, vector<32x32xf32>, vector<8x32xf32> -> vector<8x32xf32>
    %26 = vector.broadcast %16 : vector<1x32xf32> to vector<8x32xf32>
    %27 = arith.addf %25, %26 : vector<8x32xf32>
    %cst_29 = arith.constant 0.000000e+00 : f32
    %28 = vector.broadcast %cst_29 : f32 to vector<8x32xf32>
    %29 = arith.maximumf %27, %28 : vector<8x32xf32>
    %cst_30 = arith.constant dense<0.000000e+00> : vector<8x8xf32>
    %30 = tpu.matmul %29, %20, %cst_30 {dimension_numbers = #tpu.dot_dimension_numbers<[1], [0], [0], [1], [0, 0, 1, 1], [], []>} : vector<8x32xf32>, vector<32x8xf32>, vector<8x8xf32> -> vector<8x8xf32>
    %31 = vector.broadcast %24 : vector<1x8xf32> to vector<8x8xf32>
    %32 = arith.addf %30, %31 : vector<8x8xf32>
    %c0_31 = arith.constant 0 : index
    %c0_32 = arith.constant 0 : index
    %c0_33 = arith.constant 0 : index
    %33 = vector.load %arg14[%c0_31, %c0_32, %c0_33] : memref<2x8x8xf32, #tpu.memory_space<vmem>>, vector<1x8x8xf32>
    %34 = vector.shape_cast %33 : vector<1x8x8xf32> to vector<8x8xf32>
    %35 = vector.shape_cast %32 : vector<8x8xf32> to vector<1x8x8xf32>
    tpu.vector_store %arg14[%c0_31, %c0_32, %c0_33], %35 {strides = array<i32>} : memref<2x8x8xf32, #tpu.memory_space<vmem>>, vector<1x8x8xf32>,
    %c1 = arith.constant 1 : index
    %c0_34 = arith.constant 0 : index
    %c0_35 = arith.constant 0 : index
    %36 = vector.load %arg10[%c1, %c0_34, %c0_35] : memref<2x32x32xf32, #tpu.memory_space<vmem>>, vector<1x32x32xf32>
    %37 = vector.shape_cast %36 : vector<1x32x32xf32> to vector<32x32xf32>
    %38 = arith.mulf %37, %2 : vector<32x32xf32>
    %39 = arith.addf %1, %38 : vector<32x32xf32>
    %c1_36 = arith.constant 1 : index
    %c0_37 = arith.constant 0 : index
    %c0_38 = arith.constant 0 : index
    %40 = vector.load %arg11[%c1_36, %c0_37, %c0_38] : memref<2x1x32xf32, #tpu.memory_space<vmem>>, vector<1x1x32xf32>
    %41 = vector.shape_cast %40 : vector<1x1x32xf32> to vector<1x32xf32>
    %42 = arith.mulf %41, %4 : vector<1x32xf32>
    %43 = arith.addf %3, %42 : vector<1x32xf32>
    %c1_39 = arith.constant 1 : index
    %c0_40 = arith.constant 0 : index
    %c0_41 = arith.constant 0 : index
    %44 = vector.load %arg12[%c1_39, %c0_40, %c0_41] : memref<2x32x8xf32, #tpu.memory_space<vmem>>, vector<1x32x8xf32>
    %45 = vector.shape_cast %44 : vector<1x32x8xf32> to vector<32x8xf32>
    %46 = arith.mulf %45, %6 : vector<32x8xf32>
    %47 = arith.addf %5, %46 : vector<32x8xf32>
    %c1_42 = arith.constant 1 : index
    %c0_43 = arith.constant 0 : index
    %c0_44 = arith.constant 0 : index
    %48 = vector.load %arg13[%c1_42, %c0_43, %c0_44] : memref<2x1x8xf32, #tpu.memory_space<vmem>>, vector<1x1x8xf32>
    %49 = vector.shape_cast %48 : vector<1x1x8xf32> to vector<1x8xf32>
    %50 = arith.mulf %49, %8 : vector<1x8xf32>
    %51 = arith.addf %7, %50 : vector<1x8xf32>
    %cst_45 = arith.constant dense<0.000000e+00> : vector<8x32xf32>
    %52 = tpu.matmul %0, %39, %cst_45 {dimension_numbers = #tpu.dot_dimension_numbers<[1], [0], [0], [1], [0, 0, 1, 1], [], []>} : vector<8x32xf32>, vector<32x32xf32>, vector<8x32xf32> -> vector<8x32xf32>
    %53 = vector.broadcast %43 : vector<1x32xf32> to vector<8x32xf32>
    %54 = arith.addf %52, %53 : vector<8x32xf32>
    %cst_46 = arith.constant 0.000000e+00 : f32
    %55 = vector.broadcast %cst_46 : f32 to vector<8x32xf32>
    %56 = arith.maximumf %54, %55 : vector<8x32xf32>
    %cst_47 = arith.constant dense<0.000000e+00> : vector<8x8xf32>
    %57 = tpu.matmul %56, %47, %cst_47 {dimension_numbers = #tpu.dot_dimension_numbers<[1], [0], [0], [1], [0, 0, 1, 1], [], []>} : vector<8x32xf32>, vector<32x8xf32>, vector<8x8xf32> -> vector<8x8xf32>
    %58 = vector.broadcast %51 : vector<1x8xf32> to vector<8x8xf32>
    %59 = arith.addf %57, %58 : vector<8x8xf32>
    %c1_48 = arith.constant 1 : index
    %c0_49 = arith.constant 0 : index
    %c0_50 = arith.constant 0 : index
    %60 = vector.load %arg14[%c1_48, %c0_49, %c0_50] : memref<2x8x8xf32, #tpu.memory_space<vmem>>, vector<1x8x8xf32>
    %61 = vector.shape_cast %60 : vector<1x8x8xf32> to vector<8x8xf32>
    %62 = vector.shape_cast %59 : vector<8x8xf32> to vector<1x8x8xf32>
    tpu.vector_store %arg14[%c1_48, %c0_49, %c0_50], %62 {strides = array<i32>} : memref<2x8x8xf32, #tpu.memory_space<vmem>>, vector<1x8x8xf32>,
    return
  }
  func.func @transform_0(%arg0: i32) -> (i32, i32) {
    %c0_i32 = arith.constant 0 : i32
    %c0_i32_0 = arith.constant 0 : i32
    %c0_i32_1 = arith.constant 0 : i32
    return %c0_i32, %c0_i32_0 : i32, i32
  }
  func.func @transform_1(%arg0: i32) -> (i32, i32) {
    %c0_i32 = arith.constant 0 : i32
    %c0_i32_0 = arith.constant 0 : i32
    %c0_i32_1 = arith.constant 0 : i32
    return %c0_i32, %c0_i32_0 : i32, i32
  }
  func.func @transform_2(%arg0: i32) -> (i32, i32) {
    %c0_i32 = arith.constant 0 : i32
    %c0_i32_0 = arith.constant 0 : i32
    %c0_i32_1 = arith.constant 0 : i32
    return %c0_i32, %c0_i32_0 : i32, i32
  }
  func.func @transform_3(%arg0: i32) -> (i32, i32) {
    %c0_i32 = arith.constant 0 : i32
    %c0_i32_0 = arith.constant 0 : i32
    %c0_i32_1 = arith.constant 0 : i32
    return %c0_i32, %c0_i32_0 : i32, i32
  }
  func.func @transform_4(%arg0: i32) -> (i32, i32) {
    %c0_i32 = arith.constant 0 : i32
    %c0_i32_0 = arith.constant 0 : i32
    %c0_i32_1 = arith.constant 0 : i32
    return %c0_i32, %c0_i32_0 : i32, i32
  }
  func.func @transform_5(%arg0: i32) -> (i32, i32) {
    %c0_i32 = arith.constant 0 : i32
    %c0_i32_0 = arith.constant 0 : i32
    %c0_i32_1 = arith.constant 0 : i32
    return %c0_i32, %c0_i32_0 : i32, i32
  }
  func.func @transform_6(%arg0: i32) -> (i32, i32) {
    %c0_i32 = arith.constant 0 : i32
    %c0_i32_0 = arith.constant 0 : i32
    %c0_i32_1 = arith.constant 0 : i32
    return %c0_i32, %c0_i32_0 : i32, i32
  }
  func.func @transform_7(%arg0: i32) -> (i32, i32) {
    %c0_i32 = arith.constant 0 : i32
    %c0_i32_0 = arith.constant 0 : i32
    %c0_i32_1 = arith.constant 0 : i32
    return %c0_i32, %c0_i32_0 : i32, i32
  }
  func.func @transform_8(%arg0: i32) -> (i32, i32) {
    %c0_i32 = arith.constant 0 : i32
    %c0_i32_0 = arith.constant 0 : i32
    %c0_i32_1 = arith.constant 0 : i32
    return %c0_i32, %c0_i32_0 : i32, i32
  }
  func.func @transform_9(%arg0: i32) -> (i32, i32, i32) {
    %c0_i32 = arith.constant 0 : i32
    %c0_i32_0 = arith.constant 0 : i32
    %c0_i32_1 = arith.constant 0 : i32
    return %arg0, %c0_i32, %c0_i32_0 : i32, i32, i32
  }
  func.func @transform_10(%arg0: i32) -> (i32, i32, i32) {
    %c0_i32 = arith.constant 0 : i32
    %c0_i32_0 = arith.constant 0 : i32
    %c0_i32_1 = arith.constant 0 : i32
    return %arg0, %c0_i32, %c0_i32_0 : i32, i32, i32
  }
  func.func @transform_11(%arg0: i32) -> (i32, i32, i32) {
    %c0_i32 = arith.constant 0 : i32
    %c0_i32_0 = arith.constant 0 : i32
    %c0_i32_1 = arith.constant 0 : i32
    return %arg0, %c0_i32, %c0_i32_0 : i32, i32, i32
  }
  func.func @transform_12(%arg0: i32) -> (i32, i32, i32) {
    %c0_i32 = arith.constant 0 : i32
    %c0_i32_0 = arith.constant 0 : i32
    %c0_i32_1 = arith.constant 0 : i32
    return %arg0, %c0_i32, %c0_i32_0 : i32, i32, i32
  }
  func.func @transform_13(%arg0: i32) -> (i32, i32, i32) {
    %c0_i32 = arith.constant 0 : i32
    %c0_i32_0 = arith.constant 0 : i32
    %c0_i32_1 = arith.constant 0 : i32
    return %arg0, %c0_i32, %c0_i32_0 : i32, i32, i32
  }
}

</mosaic_0001>

<llo_original>
// kernel: tpu_custom_call.1
$region0: #{tpu_custom_call.1}
  #allocation0 [shape = 'u32[]', space=smem, size = 0x4, offset = 0x4, fixed_abs, tag = 'smem constant byte address 0x4 - core index']
  #allocation1 [shape = 'u32[144,128]{1,0:T(1,128)}', space=vmem, size = 0x12000, scoped, tag = 'internal scratch']
  %s0 = inlined_call_operand.vmem [shape: f32[8,32], index: 0, kind: input, shape index: {}]
  %s1 = inlined_call_operand.vmem [shape: f32[32,32], index: 1, kind: input, shape index: {}]
  %s2 = inlined_call_operand.vmem [shape: f32[1,32], index: 2, kind: input, shape index: {}]
  %s3 = inlined_call_operand.vmem [shape: f32[32,32], index: 3, kind: input, shape index: {}]
  %s4 = inlined_call_operand.vmem [shape: f32[1,32], index: 4, kind: input, shape index: {}]
  %s5 = inlined_call_operand.vmem [shape: f32[32,8], index: 5, kind: input, shape index: {}]
  %s6 = inlined_call_operand.vmem [shape: f32[1,8], index: 6, kind: input, shape index: {}]
  %s7 = inlined_call_operand.vmem [shape: f32[32,8], index: 7, kind: input, shape index: {}]
  %s8 = inlined_call_operand.vmem [shape: f32[1,8], index: 8, kind: input, shape index: {}]
  %s9 = inlined_call_operand.vmem [shape: f32[4,32,32], index: 9, kind: input, shape index: {}]
  %s10 = inlined_call_operand.vmem [shape: f32[4,1,32], index: 10, kind: input, shape index: {}]
  %s11 = inlined_call_operand.vmem [shape: f32[4,32,8], index: 11, kind: input, shape index: {}]
  %s12 = inlined_call_operand.vmem [shape: f32[4,1,8], index: 12, kind: input, shape index: {}]
  %s13 = inlined_call_operand.hbm [shape: f32[4,8,8], index: 13, kind: output, shape index: {}]
  %s14 = sld [smem:[#allocation0]]
  $region85: #{tpu_custom_call.1} parent=0
    _
  %s16 = ssub.s32 1, %s14
  %s17 = scalar_select 0, %s16, %s14
  $region1: #{tpu_custom_call.1} parent=0
    #allocation2 [shape = 'u8[16384]{0}', space=vmem, size = 0x4000, scoped, tag = 'output window, operand 0']
    #allocation3 [shape = 's32[2]{0}', space=sflag, size = 0x8, scoped, tag = 'scoped memory for tpu_custom_call.1']
    %18 = vsyncpa [#allocation3], 0
    %s19 = scalar_lea.sflag [#allocation3], 1
    %20 = vsyncpa %s19, 0
    loop: start=0, step=1, limit=4
    $region2: #{tpu_custom_call.1} parent=1 // loop_pre_header
      _
    $region3: #{tpu_custom_call.1} parent=1 // loop_header
      %s22 = sphi 0, %s26
      %p23 = scmp.ge.s32.totalorder %s22, 4
      %s30 = sphi 0, %s30
      %s32 = sphi 0, %s30
      %s33 = sphi 0, %s32
      %s47 = sphi 0, %s33
      %s51 = sphi 0, %s51
      %s53 = sphi 0, %s51
      %s54 = sphi 0, %s53
      %s68 = sphi 0, %s54
      %s72 = sphi 0, %s72
      %s74 = sphi 0, %s72
      %s75 = sphi 0, %s74
      %s89 = sphi 0, %s75
      %s93 = sphi 0, %s93
      %s95 = sphi 0, %s93
      %s96 = sphi 0, %s95
      %s110 = sphi 0, %s96
      %s114 = sphi 0, %s114
      %s116 = sphi 0, %s114
      %s117 = sphi 0, %s116
      %s131 = sphi 0, %s117
      %s135 = sphi 0, %s135
      %s137 = sphi 0, %s135
      %s138 = sphi 0, %s137
      %s152 = sphi 0, %s138
      %s156 = sphi 0, %s156
      %s158 = sphi 0, %s156
      %s159 = sphi 0, %s158
      %s173 = sphi 0, %s159
      %s177 = sphi 0, %s177
      %s179 = sphi 0, %s177
      %s180 = sphi 0, %s179
      %s194 = sphi 0, %s180
      %s198 = sphi 0, %s198
      %s200 = sphi 0, %s198
      %s201 = sphi 0, %s200
      %s215 = sphi 0, %s201
      %s221 = sphi 0, %s223
      %s224 = sphi 0, %s221
      %s225 = sphi 0, %s224
      %s241 = sphi 0, %s225
      %s247 = sphi 0, %s249
      %s250 = sphi 0, %s247
      %s251 = sphi 0, %s250
      %s267 = sphi 0, %s251
      %s273 = sphi 0, %s275
      %s276 = sphi 0, %s273
      %s277 = sphi 0, %s276
      %s293 = sphi 0, %s277
      %s299 = sphi 0, %s301
      %s302 = sphi 0, %s299
      %s303 = sphi 0, %s302
      %s319 = sphi 0, %s303
      %s325 = sphi 0, %s327
      %s328 = sphi 0, %s325
      %s329 = sphi 0, %s328
      %s345 = sphi 0, %s329
    $region4: #{tpu_custom_call.1} parent=1 // loop_header_branch
      %25 = sbr.rel (%p23) target = $region8
    $region5: #{tpu_custom_call.1} parent=1 // loop_body
      %s27 = ssub.s32 %s22, 1
      %s28 = ssub.s32 %s22, 2
      %s29 = sadd.s32 %s22, 1
      %s31 = sadd.s32 %s30, 1
      %p34 = scmp.eq.s32.totalorder %s22, 1
      %p35 = scmp.ne.s32.totalorder %s30, %s32
      %p36 = scmp.eq.s32.totalorder %s22, 0
      %p37 = por %p35, %p36
      %p38 = scmp.ne.s32.totalorder %s30, %s32
      %p39 = scmp.eq.s32.totalorder %s27, 1
      %p40 = por %p38, %p39
      %p41 = scmp.ne.s32.totalorder %s32, %s33
      %p42 = scmp.eq.s32.totalorder %s27, 0
      %p43 = por %p41, %p42
      %p44 = scmp.ne.s32.totalorder %s32, %s33
      %p45 = scmp.eq.s32.totalorder %s28, 1
      %p46 = por %p44, %p45
      %p48 = scmp.ne.s32.totalorder %s33, %s47
      %p49 = scmp.eq.s32.totalorder %s28, 0
      %p50 = por %p48, %p49
      %s52 = sadd.s32 %s51, 1
      %p55 = scmp.eq.s32.totalorder %s22, 1
      %p56 = scmp.ne.s32.totalorder %s51, %s53
      %p57 = scmp.eq.s32.totalorder %s22, 0
      %p58 = por %p56, %p57
      %p59 = scmp.ne.s32.totalorder %s51, %s53
      %p60 = scmp.eq.s32.totalorder %s27, 1
      %p61 = por %p59, %p60
      %p62 = scmp.ne.s32.totalorder %s53, %s54
      %p63 = scmp.eq.s32.totalorder %s27, 0
      %p64 = por %p62, %p63
      %p65 = scmp.ne.s32.totalorder %s53, %s54
      %p66 = scmp.eq.s32.totalorder %s28, 1
      %p67 = por %p65, %p66
      %p69 = scmp.ne.s32.totalorder %s54, %s68
      %p70 = scmp.eq.s32.totalorder %s28, 0
      %p71 = por %p69, %p70
      %s73 = sadd.s32 %s72, 1
      %p76 = scmp.eq.s32.totalorder %s22, 1
      %p77 = scmp.ne.s32.totalorder %s72, %s74
      %p78 = scmp.eq.s32.totalorder %s22, 0
      %p79 = por %p77, %p78
      %p80 = scmp.ne.s32.totalorder %s72, %s74
      %p81 = scmp.eq.s32.totalorder %s27, 1
      %p82 = por %p80, %p81
      %p83 = scmp.ne.s32.totalorder %s74, %s75
      %p84 = scmp.eq.s32.totalorder %s27, 0
      %p85 = por %p83, %p84
      %p86 = scmp.ne.s32.totalorder %s74, %s75
      %p87 = scmp.eq.s32.totalorder %s28, 1
      %p88 = por %p86, %p87
      %p90 = scmp.ne.s32.totalorder %s75, %s89
      %p91 = scmp.eq.s32.totalorder %s28, 0
      %p92 = por %p90, %p91
      %s94 = sadd.s32 %s93, 1
      %p97 = scmp.eq.s32.totalorder %s22, 1
      %p98 = scmp.ne.s32.totalorder %s93, %s95
      %p99 = scmp.eq.s32.totalorder %s22, 0
      %p100 = por %p98, %p99
      %p101 = scmp.ne.s32.totalorder %s93, %s95
      %p102 = scmp.eq.s32.totalorder %s27, 1
      %p103 = por %p101, %p102
      %p104 = scmp.ne.s32.totalorder %s95, %s96
      %p105 = scmp.eq.s32.totalorder %s27, 0
      %p106 = por %p104, %p105
      %p107 = scmp.ne.s32.totalorder %s95, %s96
      %p108 = scmp.eq.s32.totalorder %s28, 1
      %p109 = por %p107, %p108
      %p111 = scmp.ne.s32.totalorder %s96, %s110
      %p112 = scmp.eq.s32.totalorder %s28, 0
      %p113 = por %p111, %p112
      %s115 = sadd.s32 %s114, 1
      %p118 = scmp.eq.s32.totalorder %s22, 1
      %p119 = scmp.ne.s32.totalorder %s114, %s116
      %p120 = scmp.eq.s32.totalorder %s22, 0
      %p121 = por %p119, %p120
      %p122 = scmp.ne.s32.totalorder %s114, %s116
      %p123 = scmp.eq.s32.totalorder %s27, 1
      %p124 = por %p122, %p123
      %p125 = scmp.ne.s32.totalorder %s116, %s117
      %p126 = scmp.eq.s32.totalorder %s27, 0
      %p127 = por %p125, %p126
      %p128 = scmp.ne.s32.totalorder %s116, %s117
      %p129 = scmp.eq.s32.totalorder %s28, 1
      %p130 = por %p128, %p129
      %p132 = scmp.ne.s32.totalorder %s117, %s131
      %p133 = scmp.eq.s32.totalorder %s28, 0
      %p134 = por %p132, %p133
      %s136 = sadd.s32 %s135, 1
      %p139 = scmp.eq.s32.totalorder %s22, 1
      %p140 = scmp.ne.s32.totalorder %s135, %s137
      %p141 = scmp.eq.s32.totalorder %s22, 0
      %p142 = por %p140, %p141
      %p143 = scmp.ne.s32.totalorder %s135, %s137
      %p144 = scmp.eq.s32.totalorder %s27, 1
      %p145 = por %p143, %p144
      %p146 = scmp.ne.s32.totalorder %s137, %s138
      %p147 = scmp.eq.s32.totalorder %s27, 0
      %p148 = por %p146, %p147
      %p149 = scmp.ne.s32.totalorder %s137, %s138
      %p150 = scmp.eq.s32.totalorder %s28, 1
      %p151 = por %p149, %p150
      %p153 = scmp.ne.s32.totalorder %s138, %s152
      %p154 = scmp.eq.s32.totalorder %s28, 0
      %p155 = por %p153, %p154
      %s157 = sadd.s32 %s156, 1
      %p160 = scmp.eq.s32.totalorder %s22, 1
      %p161 = scmp.ne.s32.totalorder %s156, %s158
      %p162 = scmp.eq.s32.totalorder %s22, 0
      %p163 = por %p161, %p162
      %p164 = scmp.ne.s32.totalorder %s156, %s158
      %p165 = scmp.eq.s32.totalorder %s27, 1
      %p166 = por %p164, %p165
      %p167 = scmp.ne.s32.totalorder %s158, %s159
      %p168 = scmp.eq.s32.totalorder %s27, 0
      %p169 = por %p167, %p168
      %p170 = scmp.ne.s32.totalorder %s158, %s159
      %p171 = scmp.eq.s32.totalorder %s28, 1
      %p172 = por %p170, %p171
      %p174 = scmp.ne.s32.totalorder %s159, %s173
      %p175 = scmp.eq.s32.totalorder %s28, 0
      %p176 = por %p174, %p175
      %s178 = sadd.s32 %s177, 1
      %p181 = scmp.eq.s32.totalorder %s22, 1
      %p182 = scmp.ne.s32.totalorder %s177, %s179
      %p183 = scmp.eq.s32.totalorder %s22, 0
      %p184 = por %p182, %p183
      %p185 = scmp.ne.s32.totalorder %s177, %s179
      %p186 = scmp.eq.s32.totalorder %s27, 1
      %p187 = por %p185, %p186
      %p188 = scmp.ne.s32.totalorder %s179, %s180
      %p189 = scmp.eq.s32.totalorder %s27, 0
      %p190 = por %p188, %p189
      %p191 = scmp.ne.s32.totalorder %s179, %s180
      %p192 = scmp.eq.s32.totalorder %s28, 1
      %p193 = por %p191, %p192
      %p195 = scmp.ne.s32.totalorder %s180, %s194
      %p196 = scmp.eq.s32.totalorder %s28, 0
      %p197 = por %p195, %p196
      %s199 = sadd.s32 %s198, 1
      %p202 = scmp.eq.s32.totalorder %s22, 1
      %p203 = scmp.ne.s32.totalorder %s198, %s200
      %p204 = scmp.eq.s32.totalorder %s22, 0
      %p205 = por %p203, %p204
      %p206 = scmp.ne.s32.totalorder %s198, %s200
      %p207 = scmp.eq.s32.totalorder %s27, 1
      %p208 = por %p206, %p207
      %p209 = scmp.ne.s32.totalorder %s200, %s201
      %p210 = scmp.eq.s32.totalorder %s27, 0
      %p211 = por %p209, %p210
      %p212 = scmp.ne.s32.totalorder %s200, %s201
      %p213 = scmp.eq.s32.totalorder %s28, 1
      %p214 = por %p212, %p213
      %p216 = scmp.ne.s32.totalorder %s201, %s215
      %p217 = scmp.eq.s32.totalorder %s28, 0
      %p218 = por %p216, %p217
      %s219 = ssub.s32 %s22, %s29
      %p220 = scmp.eq.s32.totalorder %s219, 0
      %s222 = sadd.s32 %s221, 1
      %s223 = scalar_select %p220, %s221, %s222
      %p226 = pneg %p220
      %p227 = scmp.eq.s32.totalorder %s22, 1
      %p228 = por %p226, %p227
      %p229 = scmp.ne.s32.totalorder %s221, %s224
      %p230 = scmp.eq.s32.totalorder %s22, 0
      %p231 = por %p229, %p230
      %p232 = scmp.ne.s32.totalorder %s221, %s224
      %p233 = scmp.eq.s32.totalorder %s27, 1
      %p234 = por %p232, %p233
      %p235 = scmp.ne.s32.totalorder %s224, %s225
      %p236 = scmp.eq.s32.totalorder %s27, 0
      %p237 = por %p235, %p236
      %p238 = scmp.ne.s32.totalorder %s224, %s225
      %p239 = scmp.eq.s32.totalorder %s28, 1
      %p240 = por %p238, %p239
      %p242 = scmp.ne.s32.totalorder %s225, %s241
      %p243 = scmp.eq.s32.totalorder %s28, 0
      %p244 = por %p242, %p243
      %s245 = ssub.s32 %s22, %s29
      %p246 = scmp.eq.s32.totalorder %s245, 0
      %s248 = sadd.s32 %s247, 1
      %s249 = scalar_select %p246, %s247, %s248
      %p252 = pneg %p246
      %p253 = scmp.eq.s32.totalorder %s22, 1
      %p254 = por %p252, %p253
      %p255 = scmp.ne.s32.totalorder %s247, %s250
      %p256 = scmp.eq.s32.totalorder %s22, 0
      %p257 = por %p255, %p256
      %p258 = scmp.ne.s32.totalorder %s247, %s250
      %p259 = scmp.eq.s32.totalorder %s27, 1
      %p260 = por %p258, %p259
      %p261 = scmp.ne.s32.totalorder %s250, %s251
      %p262 = scmp.eq.s32.totalorder %s27, 0
      %p263 = por %p261, %p262
      %p264 = scmp.ne.s32.totalorder %s250, %s251
      %p265 = scmp.eq.s32.totalorder %s28, 1
      %p266 = por %p264, %p265
      %p268 = scmp.ne.s32.totalorder %s251, %s267
      %p269 = scmp.eq.s32.totalorder %s28, 0
      %p270 = por %p268, %p269
      %s271 = ssub.s32 %s22, %s29
      %p272 = scmp.eq.s32.totalorder %s271, 0
      %s274 = sadd.s32 %s273, 1
      %s275 = scalar_select %p272, %s273, %s274
      %p278 = pneg %p272
      %p279 = scmp.eq.s32.totalorder %s22, 1
      %p280 = por %p278, %p279
      %p281 = scmp.ne.s32.totalorder %s273, %s276
      %p282 = scmp.eq.s32.totalorder %s22, 0
      %p283 = por %p281, %p282
      %p284 = scmp.ne.s32.totalorder %s273, %s276
      %p285 = scmp.eq.s32.totalorder %s27, 1
      %p286 = por %p284, %p285
      %p287 = scmp.ne.s32.totalorder %s276, %s277
      %p288 = scmp.eq.s32.totalorder %s27, 0
      %p289 = por %p287, %p288
      %p290 = scmp.ne.s32.totalorder %s276, %s277
      %p291 = scmp.eq.s32.totalorder %s28, 1
      %p292 = por %p290, %p291
      %p294 = scmp.ne.s32.totalorder %s277, %s293
      %p295 = scmp.eq.s32.totalorder %s28, 0
      %p296 = por %p294, %p295
      %s297 = ssub.s32 %s22, %s29
      %p298 = scmp.eq.s32.totalorder %s297, 0
      %s300 = sadd.s32 %s299, 1
      %s301 = scalar_select %p298, %s299, %s300
      %p304 = pneg %p298
      %p305 = scmp.eq.s32.totalorder %s22, 1
      %p306 = por %p304, %p305
      %p307 = scmp.ne.s32.totalorder %s299, %s302
      %p308 = scmp.eq.s32.totalorder %s22, 0
      %p309 = por %p307, %p308
      %p310 = scmp.ne.s32.totalorder %s299, %s302
      %p311 = scmp.eq.s32.totalorder %s27, 1
      %p312 = por %p310, %p311
      %p313 = scmp.ne.s32.totalorder %s302, %s303
      %p314 = scmp.eq.s32.totalorder %s27, 0
      %p315 = por %p313, %p314
      %p316 = scmp.ne.s32.totalorder %s302, %s303
      %p317 = scmp.eq.s32.totalorder %s28, 1
      %p318 = por %p316, %p317
      %p320 = scmp.ne.s32.totalorder %s303, %s319
      %p321 = scmp.eq.s32.totalorder %s28, 0
      %p322 = por %p320, %p321
      %s323 = ssub.s32 %s22, %s29
      %p324 = scmp.eq.s32.totalorder %s323, 0
      %s326 = sadd.s32 %s325, 1
      %s327 = scalar_select %p324, %s325, %s326
      %p330 = pneg %p324
      %p331 = scmp.eq.s32.totalorder %s22, 1
      %p332 = por %p330, %p331
      %p333 = scmp.ne.s32.totalorder %s325, %s328
      %p334 = scmp.eq.s32.totalorder %s22, 0
      %p335 = por %p333, %p334
      %p336 = scmp.ne.s32.totalorder %s325, %s328
      %p337 = scmp.eq.s32.totalorder %s27, 1
      %p338 = por %p336, %p337
      %p339 = scmp.ne.s32.totalorder %s328, %s329
      %p340 = scmp.eq.s32.totalorder %s27, 0
      %p341 = por %p339, %p340
      %p342 = scmp.ne.s32.totalorder %s328, %s329
      %p343 = scmp.eq.s32.totalorder %s28, 1
      %p344 = por %p342, %p343
      %p346 = scmp.ne.s32.totalorder %s329, %s345
      %p347 = scmp.eq.s32.totalorder %s28, 0
      %p348 = por %p346, %p347
      %p349 = scmp.le.s32.totalorder 1, %s22
      %p350 = scmp.lt.s32.totalorder %s22, 3
      %p351 = pnand %p349, %p350
      %p352 = pneg %p351
      // Predicated region
      $region9: #{tpu_custom_call.1} parent=5 // pred_check
        _
      $region10: #{tpu_custom_call.1} parent=5 // pred_check_branch
        %354 = sbr.rel (%p351) target = $region12
      $region11: #{tpu_custom_call.1} parent=5 // pred_region
        %s355 = ssub.s32 %s22, 1
        // Predicated region
        $region13: #{tpu_custom_call.1} parent=11 // pred_check
          %p356 = pneg %p43
        $region14: #{tpu_custom_call.1} parent=11 // pred_check_branch
          %358 = sbr.rel (%p356) target = $region16
        $region15: #{tpu_custom_call.1} parent=11 // pred_region
          _
        $region16: #{tpu_custom_call.1} parent=11 // pred_fallthru
          _
        // Predicated region
        $region17: #{tpu_custom_call.1} parent=11 // pred_check
          %p359 = pneg %p64
        $region18: #{tpu_custom_call.1} parent=11 // pred_check_branch
          %361 = sbr.rel (%p359) target = $region20
        $region19: #{tpu_custom_call.1} parent=11 // pred_region
          _
        $region20: #{tpu_custom_call.1} parent=11 // pred_fallthru
          _
        // Predicated region
        $region21: #{tpu_custom_call.1} parent=11 // pred_check
          %p362 = pneg %p85
        $region22: #{tpu_custom_call.1} parent=11 // pred_check_branch
          %364 = sbr.rel (%p362) target = $region24
        $region23: #{tpu_custom_call.1} parent=11 // pred_region
          _
        $region24: #{tpu_custom_call.1} parent=11 // pred_fallthru
          _
        // Predicated region
        $region25: #{tpu_custom_call.1} parent=11 // pred_check
          %p365 = pneg %p106
        $region26: #{tpu_custom_call.1} parent=11 // pred_check_branch
          %367 = sbr.rel (%p365) target = $region28
        $region27: #{tpu_custom_call.1} parent=11 // pred_region
          _
        $region28: #{tpu_custom_call.1} parent=11 // pred_fallthru
          _
        // Predicated region
        $region29: #{tpu_custom_call.1} parent=11 // pred_check
          %p368 = pneg %p127
        $region30: #{tpu_custom_call.1} parent=11 // pred_check_branch
          %370 = sbr.rel (%p368) target = $region32
        $region31: #{tpu_custom_call.1} parent=11 // pred_region
          _
        $region32: #{tpu_custom_call.1} parent=11 // pred_fallthru
          _
        // Predicated region
        $region33: #{tpu_custom_call.1} parent=11 // pred_check
          %p371 = pneg %p148
        $region34: #{tpu_custom_call.1} parent=11 // pred_check_branch
          %373 = sbr.rel (%p371) target = $region36
        $region35: #{tpu_custom_call.1} parent=11 // pred_region
          _
        $region36: #{tpu_custom_call.1} parent=11 // pred_fallthru
          _
        // Predicated region
        $region37: #{tpu_custom_call.1} parent=11 // pred_check
          %p374 = pneg %p169
        $region38: #{tpu_custom_call.1} parent=11 // pred_check_branch
          %376 = sbr.rel (%p374) target = $region40
        $region39: #{tpu_custom_call.1} parent=11 // pred_region
          _
        $region40: #{tpu_custom_call.1} parent=11 // pred_fallthru
          _
        // Predicated region
        $region41: #{tpu_custom_call.1} parent=11 // pred_check
          %p377 = pneg %p190
        $region42: #{tpu_custom_call.1} parent=11 // pred_check_branch
          %379 = sbr.rel (%p377) target = $region44
        $region43: #{tpu_custom_call.1} parent=11 // pred_region
          _
        $region44: #{tpu_custom_call.1} parent=11 // pred_fallthru
          _
        // Predicated region
        $region45: #{tpu_custom_call.1} parent=11 // pred_check
          %p380 = pneg %p211
        $region46: #{tpu_custom_call.1} parent=11 // pred_check_branch
          %382 = sbr.rel (%p380) target = $region48
        $region47: #{tpu_custom_call.1} parent=11 // pred_region
          _
        $region48: #{tpu_custom_call.1} parent=11 // pred_fallthru
          _
      $region12: #{tpu_custom_call.1} parent=5 // pred_fallthru
        _
      %p383 = scmp.lt.s32.totalorder %s22, 2
      // Predicated region
      $region49: #{tpu_custom_call.1} parent=5 // pred_check
        %p384 = pneg %p383
      $region50: #{tpu_custom_call.1} parent=5 // pred_check_branch
        %386 = sbr.rel (%p384) target = $region52
      $region51: #{tpu_custom_call.1} parent=5 // pred_region
        // Predicated region
        $region53: #{tpu_custom_call.1} parent=51 // pred_check
          %p387 = pneg %p231
        $region54: #{tpu_custom_call.1} parent=51 // pred_check_branch
          %389 = sbr.rel (%p387) target = $region56
        $region55: #{tpu_custom_call.1} parent=51 // pred_region
          %s390 = smul.u32 2, %s22
          %p391 = scmp.lt.s32.totalorder %s390, 3
          %s392 = scalar_select %p391, %s390, 3
          %s393 = smul.addr %s392, 4
          %s394 = smul.addr %s393, 8
          %s395 = scalar_lea.vmem %s9, %s394
          %s396 = smul.u32 2, %s22
        $region56: #{tpu_custom_call.1} parent=51 // pred_fallthru
          _
        // Predicated region
        $region57: #{tpu_custom_call.1} parent=51 // pred_check
          %p397 = pneg %p257
        $region58: #{tpu_custom_call.1} parent=51 // pred_check_branch
          %399 = sbr.rel (%p397) target = $region60
        $region59: #{tpu_custom_call.1} parent=51 // pred_region
          %s400 = smul.u32 2, %s22
          %p401 = scmp.lt.s32.totalorder %s400, 3
          %s402 = scalar_select %p401, %s400, 3
          %s403 = scalar_lea.vmem %s10, %s402
          %s404 = smul.u32 2, %s22
        $region60: #{tpu_custom_call.1} parent=51 // pred_fallthru
          _
        // Predicated region
        $region61: #{tpu_custom_call.1} parent=51 // pred_check
          %p405 = pneg %p283
        $region62: #{tpu_custom_call.1} parent=51 // pred_check_branch
          %407 = sbr.rel (%p405) target = $region64
        $region63: #{tpu_custom_call.1} parent=51 // pred_region
          %s408 = smul.u32 2, %s22
          %p409 = scmp.lt.s32.totalorder %s408, 3
          %s410 = scalar_select %p409, %s408, 3
          %s411 = smul.addr %s410, 4
          %s412 = smul.addr %s411, 8
          %s413 = scalar_lea.vmem %s11, %s412
          %s414 = smul.u32 2, %s22
        $region64: #{tpu_custom_call.1} parent=51 // pred_fallthru
          _
        // Predicated region
        $region65: #{tpu_custom_call.1} parent=51 // pred_check
          %p415 = pneg %p309
        $region66: #{tpu_custom_call.1} parent=51 // pred_check_branch
          %417 = sbr.rel (%p415) target = $region68
        $region67: #{tpu_custom_call.1} parent=51 // pred_region
          %s418 = smul.u32 2, %s22
          %p419 = scmp.lt.s32.totalorder %s418, 3
          %s420 = scalar_select %p419, %s418, 3
          %s421 = scalar_lea.vmem %s12, %s420
          %s422 = smul.u32 2, %s22
        $region68: #{tpu_custom_call.1} parent=51 // pred_fallthru
          _
      $region52: #{tpu_custom_call.1} parent=5 // pred_fallthru
        _
      %p423 = scmp.le.s32.totalorder 1, %s22
      %p424 = scmp.lt.s32.totalorder %s22, 3
      %p425 = pnand %p423, %p424
      %p426 = pneg %p425
      // Predicated region
      $region69: #{tpu_custom_call.1} parent=5 // pred_check
        _
      $region70: #{tpu_custom_call.1} parent=5 // pred_check_branch
        %428 = sbr.rel (%p425) target = $region72
      $region71: #{tpu_custom_call.1} parent=5 // pred_region
        %s429 = ssub.s32 %s22, 1
        %p430 = pneg %p43
        %p431 = pneg %p40
        %p432 = pneg %p64
        %p433 = pneg %p61
        %p434 = pneg %p85
        %p435 = pneg %p82
        %p436 = pneg %p106
        %p437 = pneg %p103
        %p438 = pneg %p127
        %p439 = pneg %p124
        %p440 = pneg %p148
        %p441 = pneg %p145
        %p442 = pneg %p169
        %p443 = pneg %p166
        %p444 = pneg %p190
        %p445 = pneg %p187
        %p446 = pneg %p211
        %p447 = pneg %p208
        %s448 = smul.u32 2, %s27
        %p449 = scmp.lt.s32.totalorder %s448, 3
        %s450 = scalar_select %p449, %s448, 3
        %s451 = smul.addr %s450, 4
        %s452 = smul.addr %s451, 8
        %s453 = scalar_lea.vmem %s9, %s452
        %p454 = pneg %p237
        %p455 = pneg %p234
        %s456 = smul.u32 2, %s27
        %p457 = scmp.lt.s32.totalorder %s456, 3
        %s458 = scalar_select %p457, %s456, 3
        %s459 = scalar_lea.vmem %s10, %s458
        %p460 = pneg %p263
        %p461 = pneg %p260
        %s462 = smul.u32 2, %s27
        %p463 = scmp.lt.s32.totalorder %s462, 3
        %s464 = scalar_select %p463, %s462, 3
        %s465 = smul.addr %s464, 4
        %s466 = smul.addr %s465, 8
        %s467 = scalar_lea.vmem %s11, %s466
        %p468 = pneg %p289
        %p469 = pneg %p286
        %s470 = smul.u32 2, %s27
        %p471 = scmp.lt.s32.totalorder %s470, 3
        %s472 = scalar_select %p471, %s470, 3
        %s473 = scalar_lea.vmem %s12, %s472
        %p474 = pneg %p315
        %p475 = pneg %p312
        %p476 = pneg %p341
        %p477 = pneg %p338
        %s478 = sand.u32 %s328, 1
        %s479 = scalar_lea.sflag [#allocation3], %s478
        %s480 = sand.u32 %s328, 1
        %s481 = smul.addr %s480, 16
        %s482 = scalar_lea.vmem [#allocation2], %s481
        %s483 = smul.u32 2, %s27
        %p484 = scmp.lt.s32.totalorder %s483, 3
        %s485 = scalar_select %p484, %s483, 3
        %s486 = smul.addr %s485, 4
        %s487 = smul.addr %s486, 8
        %s488 = scalar_lea.vmem %s9, %s487
        %s489 = smul.u32 2, %s27
        %s490 = smul.u32 2, %s27
        %p491 = scmp.lt.s32.totalorder %s490, 3
        %s492 = scalar_select %p491, %s490, 3
        %s493 = scalar_lea.vmem %s10, %s492
        %s494 = smul.u32 2, %s27
        %s495 = smul.u32 2, %s27
        %p496 = scmp.lt.s32.totalorder %s495, 3
        %s497 = scalar_select %p496, %s495, 3
        %s498 = smul.addr %s497, 4
        %s499 = smul.addr %s498, 8
        %s500 = scalar_lea.vmem %s11, %s499
        %s501 = smul.u32 2, %s27
        %s502 = smul.u32 2, %s27
        %p503 = scmp.lt.s32.totalorder %s502, 3
        %s504 = scalar_select %p503, %s502, 3
        %s505 = scalar_lea.vmem %s12, %s504
        %s506 = smul.u32 2, %s27
        %s507 = smul.u32 2, %s27
        %v508 = vld [vmem:[%s0] sm:$0xff]
        %v509 = vld [vmem:[%s1] sm:$0xff]
        %v510 = vld [vmem:[%s1 + $0x8] sm:$0xff]
        %v511 = vld [vmem:[%s1 + $0x10] sm:$0xff]
        %v512 = vld [vmem:[%s1 + $0x18] sm:$0xff]
        %v513 = vld [vmem:[%s3] sm:$0xff]
        %v514 = vld [vmem:[%s3 + $0x8] sm:$0xff]
        %v515 = vld [vmem:[%s3 + $0x10] sm:$0xff]
        %v516 = vld [vmem:[%s3 + $0x18] sm:$0xff]
        %v517 = vld [vmem:[%s2] sm:$0x1]
        %v518 = vld [vmem:[%s4] sm:$0x1]
        %v519 = vld [vmem:[%s5] sm:$0xff]
        %v520 = vld [vmem:[%s5 + $0x8] sm:$0xff]
        %v521 = vld [vmem:[%s5 + $0x10] sm:$0xff]
        %v522 = vld [vmem:[%s5 + $0x18] sm:$0xff]
        %v523 = vld [vmem:[%s7] sm:$0xff]
        %v524 = vld [vmem:[%s7 + $0x8] sm:$0xff]
        %v525 = vld [vmem:[%s7 + $0x10] sm:$0xff]
        %v526 = vld [vmem:[%s7 + $0x18] sm:$0xff]
        %v527 = vld [vmem:[%s6] sm:$0x1]
        %v528 = vld [vmem:[%s8] sm:$0x1]
        %v529 = vld [vmem:[%s488] sm:$0xff]
        %v530 = vld [vmem:[%s488 + $0x8] sm:$0xff]
        %v531 = vld [vmem:[%s488 + $0x10] sm:$0xff]
        %v532 = vld [vmem:[%s488 + $0x18] sm:$0xff]
        %v533 = vmul.f32 %v529, %v513
        %v534 = vmul.f32 %v530, %v514
        %v535 = vmul.f32 %v531, %v515
        %v536 = vmul.f32 %v532, %v516
        %v537 = vadd.f32 %v509, %v533
        %v538 = vadd.f32 %v510, %v534
        %v539 = vadd.f32 %v511, %v535
        %v540 = vadd.f32 %v512, %v536
        %v541 = vld [vmem:[%s493] sm:$0x1]
        %v542 = vmul.f32 %v541, %v518
        %v543 = vadd.f32 %v517, %v542
        %v544 = vld [vmem:[%s500] sm:$0xff]
        %v545 = vld [vmem:[%s500 + $0x8] sm:$0xff]
        %v546 = vld [vmem:[%s500 + $0x10] sm:$0xff]
        %v547 = vld [vmem:[%s500 + $0x18] sm:$0xff]
        %v548 = vmul.f32 %v544, %v523
        %v549 = vmul.f32 %v545, %v524
        %v550 = vmul.f32 %v546, %v525
        %v551 = vmul.f32 %v547, %v526
        %v552 = vadd.f32 %v519, %v548
        %v553 = vadd.f32 %v520, %v549
        %v554 = vadd.f32 %v521, %v550
        %v555 = vadd.f32 %v522, %v551
        %v556 = vld [vmem:[%s505] sm:$0x1]
        %v557 = vmul.f32 %v556, %v528
        %v558 = vadd.f32 %v527, %v557
        %v560 = vlaneseq
        %v561 = vshrl.u32 %v560, 7
        %v562 = vsub.s32 0, %v561
        %v563 = vrot.slane %v543, %v562
        %vm565 = vcmask 261120
        %v567 = vsel %vm565, %v508, 0
        %569 = vmatprep.subr.mxu0 0.0
        %570 = vmatpush1.msra.mxu0 0.0
        %571 = vmatprep.subr.mxu0 0.0
        %572 = vmatpush1.msra.mxu0 0.0
        %573 = vmatprep.subr.mxu0 0.0
        %574 = vmatpush1.msra.mxu0 0.0
        %575 = vmatprep.subr.mxu0 0.0
        %576 = vmatpush1.msra.mxu0 0.0
        %577 = vmatprep.subr.mxu0 0.0
        %578 = vmatpush1.msra.mxu0 0.0
        %579 = vmatprep.subr.mxu0 0.0
        %580 = vmatpush1.msra.mxu0 0.0
        %581 = vmatprep.subr.mxu0 0.0
        %582 = vmatpush1.msra.mxu0 0.0
        %583 = vmatprep.subr.mxu0 0.0
        %584 = vmatpush1.msra.mxu0 0.0
        %585 = vmatprep.subr.mxu0 0.0
        %586 = vmatpush1.msra.mxu0 0.0
        %587 = vmatprep.subr.mxu0 0.0
        %588 = vmatpush1.msra.mxu0 0.0
        %589 = vmatprep.subr.mxu0 0.0
        %590 = vmatpush1.msra.mxu0 0.0
        %591 = vmatprep.subr.mxu0 0.0
        %592 = vmatpush1.msra.mxu0 0.0
        %593 = vmatprep.subr.mxu0 0.0
        %594 = vmatpush1.msra.mxu0 %v540
        %595 = vmatprep.subr.mxu0 0.0
        %596 = vmatpush1.msra.mxu0 %v539
        %597 = vmatprep.subr.mxu0 0.0
        %598 = vmatpush1.msra.mxu0 %v538
        %599 = vmatprep.subr.mxu0 0.0
        %600 = vmatpush1.msra.mxu0 %v537
        %601 = vmatprep.subr.mxu0 0.0
        %602 = vmatpush2.msra.mxu0 0.0
        %603 = vmatprep.subr.mxu0 0.0
        %604 = vmatpush2.msra.mxu0 0.0
        %605 = vmatprep.subr.mxu0 0.0
        %606 = vmatpush2.msra.mxu0 0.0
        %607 = vmatprep.subr.mxu0 0.0
        %608 = vmatpush2.msra.mxu0 0.0
        %609 = vmatprep.subr.mxu0 0.0
        %610 = vmatpush2.msra.mxu0 0.0
        %611 = vmatprep.subr.mxu0 0.0
        %612 = vmatpush2.msra.mxu0 0.0
        %613 = vmatprep.subr.mxu0 0.0
        %614 = vmatpush2.msra.mxu0 0.0
        %615 = vmatprep.subr.mxu0 0.0
        %616 = vmatpush2.msra.mxu0 0.0
        %617 = vmatprep.subr.mxu0 0.0
        %618 = vmatpush2.msra.mxu0 0.0
        %619 = vmatprep.subr.mxu0 0.0
        %620 = vmatpush2.msra.mxu0 0.0
        %621 = vmatprep.subr.mxu0 0.0
        %622 = vmatpush2.msra.mxu0 0.0
        %623 = vmatprep.subr.mxu0 0.0
        %624 = vmatpush2.msra.mxu0 0.0
        %625 = vmatprep.subr.mxu0 0.0
        %626 = vmatpush2.msra.mxu0 0.0
        %627 = vmatprep.subr.mxu0 0.0
        %628 = vmatpush2.msra.mxu0 0.0
        %629 = vmatprep.subr.mxu0 0.0
        %630 = vmatpush2.msra.mxu0 0.0
        %631 = vmatprep.subr.mxu0 0.0
        %632 = vmatpush2.msra.mxu0 0.0
        %633 = vmatprep.mubr.f32.mxu0 0.0
        %634 = vmatmul.mubr.f32.gmra.mxu0 %v567
        %v635 = vpop.f32.mrf.mxu0
        %v636 = vadd.f32 %v563, %v635
        %v637 = vpop.f32.mrf.mxu0
        %638 = vdwg.mxu0
        %v639 = vmax.f32 %v636, 0.0
        %v641 = vlaneseq
        %v642 = vshrl.u32 %v641, 7
        %v643 = vsub.s32 0, %v642
        %v644 = vrot.slane %v558, %v643
        %v647 = vsel %vm565, %v639, 0
        %649 = vmatprep.subr.mxu0 0.0
        %650 = vmatpush1.msra.mxu0 0.0
        %651 = vmatprep.subr.mxu0 0.0
        %652 = vmatpush1.msra.mxu0 0.0
        %653 = vmatprep.subr.mxu0 0.0
        %654 = vmatpush1.msra.mxu0 0.0
        %655 = vmatprep.subr.mxu0 0.0
        %656 = vmatpush1.msra.mxu0 0.0
        %657 = vmatprep.subr.mxu0 0.0
        %658 = vmatpush1.msra.mxu0 0.0
        %659 = vmatprep.subr.mxu0 0.0
        %660 = vmatpush1.msra.mxu0 0.0
        %661 = vmatprep.subr.mxu0 0.0
        %662 = vmatpush1.msra.mxu0 0.0
        %663 = vmatprep.subr.mxu0 0.0
        %664 = vmatpush1.msra.mxu0 0.0
        %665 = vmatprep.subr.mxu0 0.0
        %666 = vmatpush1.msra.mxu0 0.0
        %667 = vmatprep.subr.mxu0 0.0
        %668 = vmatpush1.msra.mxu0 0.0
        %669 = vmatprep.subr.mxu0 0.0
        %670 = vmatpush1.msra.mxu0 0.0
        %671 = vmatprep.subr.mxu0 0.0
        %672 = vmatpush1.msra.mxu0 0.0
        %673 = vmatprep.subr.mxu0 0.0
        %674 = vmatpush1.msra.mxu0 %v555
        %675 = vmatprep.subr.mxu0 0.0
        %676 = vmatpush1.msra.mxu0 %v554
        %677 = vmatprep.subr.mxu0 0.0
        %678 = vmatpush1.msra.mxu0 %v553
        %679 = vmatprep.subr.mxu0 0.0
        %680 = vmatpush1.msra.mxu0 %v552
        %681 = vmatprep.subr.mxu0 0.0
        %682 = vmatpush2.msra.mxu0 0.0
        %683 = vmatprep.subr.mxu0 0.0
        %684 = vmatpush2.msra.mxu0 0.0
        %685 = vmatprep.subr.mxu0 0.0
        %686 = vmatpush2.msra.mxu0 0.0
        %687 = vmatprep.subr.mxu0 0.0
        %688 = vmatpush2.msra.mxu0 0.0
        %689 = vmatprep.subr.mxu0 0.0
        %690 = vmatpush2.msra.mxu0 0.0
        %691 = vmatprep.subr.mxu0 0.0
        %692 = vmatpush2.msra.mxu0 0.0
        %693 = vmatprep.subr.mxu0 0.0
        %694 = vmatpush2.msra.mxu0 0.0
        %695 = vmatprep.subr.mxu0 0.0
        %696 = vmatpush2.msra.mxu0 0.0
        %697 = vmatprep.subr.mxu0 0.0
        %698 = vmatpush2.msra.mxu0 0.0
        %699 = vmatprep.subr.mxu0 0.0
        %700 = vmatpush2.msra.mxu0 0.0
        %701 = vmatprep.subr.mxu0 0.0
        %702 = vmatpush2.msra.mxu0 0.0
        %703 = vmatprep.subr.mxu0 0.0
        %704 = vmatpush2.msra.mxu0 0.0
        %705 = vmatprep.subr.mxu0 0.0
        %706 = vmatpush2.msra.mxu0 0.0
        %707 = vmatprep.subr.mxu0 0.0
        %708 = vmatpush2.msra.mxu0 0.0
        %709 = vmatprep.subr.mxu0 0.0
        %710 = vmatpush2.msra.mxu0 0.0
        %711 = vmatprep.subr.mxu0 0.0
        %712 = vmatpush2.msra.mxu0 0.0
        %713 = vmatprep.mubr.f32.mxu0 0.0
        %714 = vmatmul.mubr.f32.gmra.mxu0 %v647
        %v715 = vpop.f32.mrf.mxu0
        %v716 = vadd.f32 %v644, %v715
        %v717 = vpop.f32.mrf.mxu0
        %718 = vdwg.mxu0
        %vm719 = vcmask 64512
        %720 = vst.msk [vmem:[%s482] sm:$0xff] %vm719, %v716
        %s721 = scalar_lea.vmem %s488, 32
        %v722 = vld [vmem:[%s721] sm:$0xff]
        %v723 = vld [vmem:[%s721 + $0x8] sm:$0xff]
        %v724 = vld [vmem:[%s721 + $0x10] sm:$0xff]
        %v725 = vld [vmem:[%s721 + $0x18] sm:$0xff]
        %v726 = vmul.f32 %v722, %v513
        %v727 = vmul.f32 %v723, %v514
        %v728 = vmul.f32 %v724, %v515
        %v729 = vmul.f32 %v725, %v516
        %v730 = vadd.f32 %v509, %v726
        %v731 = vadd.f32 %v510, %v727
        %v732 = vadd.f32 %v511, %v728
        %v733 = vadd.f32 %v512, %v729
        %s734 = scalar_lea.vmem %s493, 1
        %v735 = vld [vmem:[%s734] sm:$0x1]
        %v736 = vmul.f32 %v735, %v518
        %v737 = vadd.f32 %v517, %v736
        %s738 = scalar_lea.vmem %s500, 32
        %v739 = vld [vmem:[%s738] sm:$0xff]
        %v740 = vld [vmem:[%s738 + $0x8] sm:$0xff]
        %v741 = vld [vmem:[%s738 + $0x10] sm:$0xff]
        %v742 = vld [vmem:[%s738 + $0x18] sm:$0xff]
        %v743 = vmul.f32 %v739, %v523
        %v744 = vmul.f32 %v740, %v524
        %v745 = vmul.f32 %v741, %v525
        %v746 = vmul.f32 %v742, %v526
        %v747 = vadd.f32 %v519, %v743
        %v748 = vadd.f32 %v520, %v744
        %v749 = vadd.f32 %v521, %v745
        %v750 = vadd.f32 %v522, %v746
        %s751 = scalar_lea.vmem %s505, 1
        %v752 = vld [vmem:[%s751] sm:$0x1]
        %v753 = vmul.f32 %v752, %v528
        %v754 = vadd.f32 %v527, %v753
        %v756 = vlaneseq
        %v757 = vshrl.u32 %v756, 7
        %v758 = vsub.s32 0, %v757
        %v759 = vrot.slane %v737, %v758
        %761 = vmatprep.subr.mxu0 0.0
        %762 = vmatpush1.msra.mxu0 0.0
        %763 = vmatprep.subr.mxu0 0.0
        %764 = vmatpush1.msra.mxu0 0.0
        %765 = vmatprep.subr.mxu0 0.0
        %766 = vmatpush1.msra.mxu0 0.0
        %767 = vmatprep.subr.mxu0 0.0
        %768 = vmatpush1.msra.mxu0 0.0
        %769 = vmatprep.subr.mxu0 0.0
        %770 = vmatpush1.msra.mxu0 0.0
        %771 = vmatprep.subr.mxu0 0.0
        %772 = vmatpush1.msra.mxu0 0.0
        %773 = vmatprep.subr.mxu0 0.0
        %774 = vmatpush1.msra.mxu0 0.0
        %775 = vmatprep.subr.mxu0 0.0
        %776 = vmatpush1.msra.mxu0 0.0
        %777 = vmatprep.subr.mxu0 0.0
        %778 = vmatpush1.msra.mxu0 0.0
        %779 = vmatprep.subr.mxu0 0.0
        %780 = vmatpush1.msra.mxu0 0.0
        %781 = vmatprep.subr.mxu0 0.0
        %782 = vmatpush1.msra.mxu0 0.0
        %783 = vmatprep.subr.mxu0 0.0
        %784 = vmatpush1.msra.mxu0 0.0
        %785 = vmatprep.subr.mxu0 0.0
        %786 = vmatpush1.msra.mxu0 %v733
        %787 = vmatprep.subr.mxu0 0.0
        %788 = vmatpush1.msra.mxu0 %v732
        %789 = vmatprep.subr.mxu0 0.0
        %790 = vmatpush1.msra.mxu0 %v731
        %791 = vmatprep.subr.mxu0 0.0
        %792 = vmatpush1.msra.mxu0 %v730
        %793 = vmatprep.subr.mxu0 0.0
        %794 = vmatpush2.msra.mxu0 0.0
        %795 = vmatprep.subr.mxu0 0.0
        %796 = vmatpush2.msra.mxu0 0.0
        %797 = vmatprep.subr.mxu0 0.0
        %798 = vmatpush2.msra.mxu0 0.0
        %799 = vmatprep.subr.mxu0 0.0
        %800 = vmatpush2.msra.mxu0 0.0
        %801 = vmatprep.subr.mxu0 0.0
        %802 = vmatpush2.msra.mxu0 0.0
        %803 = vmatprep.subr.mxu0 0.0
        %804 = vmatpush2.msra.mxu0 0.0
        %805 = vmatprep.subr.mxu0 0.0
        %806 = vmatpush2.msra.mxu0 0.0
        %807 = vmatprep.subr.mxu0 0.0
        %808 = vmatpush2.msra.mxu0 0.0
        %809 = vmatprep.subr.mxu0 0.0
        %810 = vmatpush2.msra.mxu0 0.0
        %811 = vmatprep.subr.mxu0 0.0
        %812 = vmatpush2.msra.mxu0 0.0
        %813 = vmatprep.subr.mxu0 0.0
        %814 = vmatpush2.msra.mxu0 0.0
        %815 = vmatprep.subr.mxu0 0.0
        %816 = vmatpush2.msra.mxu0 0.0
        %817 = vmatprep.subr.mxu0 0.0
        %818 = vmatpush2.msra.mxu0 0.0
        %819 = vmatprep.subr.mxu0 0.0
        %820 = vmatpush2.msra.mxu0 0.0
        %821 = vmatprep.subr.mxu0 0.0
        %822 = vmatpush2.msra.mxu0 0.0
        %823 = vmatprep.subr.mxu0 0.0
        %824 = vmatpush2.msra.mxu0 0.0
        %825 = vmatprep.mubr.f32.mxu0 0.0
        %826 = vmatmul.mubr.f32.gmra.mxu0 %v567
        %v827 = vpop.f32.mrf.mxu0
        %v828 = vadd.f32 %v759, %v827
        %v829 = vpop.f32.mrf.mxu0
        %830 = vdwg.mxu0
        %v831 = vmax.f32 %v828, 0.0
        %v833 = vlaneseq
        %v834 = vshrl.u32 %v833, 7
        %v835 = vsub.s32 0, %v834
        %v836 = vrot.slane %v754, %v835
        %v839 = vsel %vm565, %v831, 0
        %841 = vmatprep.subr.mxu0 0.0
        %842 = vmatpush1.msra.mxu0 0.0
        %843 = vmatprep.subr.mxu0 0.0
        %844 = vmatpush1.msra.mxu0 0.0
        %845 = vmatprep.subr.mxu0 0.0
        %846 = vmatpush1.msra.mxu0 0.0
        %847 = vmatprep.subr.mxu0 0.0
        %848 = vmatpush1.msra.mxu0 0.0
        %849 = vmatprep.subr.mxu0 0.0
        %850 = vmatpush1.msra.mxu0 0.0
        %851 = vmatprep.subr.mxu0 0.0
        %852 = vmatpush1.msra.mxu0 0.0
        %853 = vmatprep.subr.mxu0 0.0
        %854 = vmatpush1.msra.mxu0 0.0
        %855 = vmatprep.subr.mxu0 0.0
        %856 = vmatpush1.msra.mxu0 0.0
        %857 = vmatprep.subr.mxu0 0.0
        %858 = vmatpush1.msra.mxu0 0.0
        %859 = vmatprep.subr.mxu0 0.0
        %860 = vmatpush1.msra.mxu0 0.0
        %861 = vmatprep.subr.mxu0 0.0
        %862 = vmatpush1.msra.mxu0 0.0
        %863 = vmatprep.subr.mxu0 0.0
        %864 = vmatpush1.msra.mxu0 0.0
        %865 = vmatprep.subr.mxu0 0.0
        %866 = vmatpush1.msra.mxu0 %v750
        %867 = vmatprep.subr.mxu0 0.0
        %868 = vmatpush1.msra.mxu0 %v749
        %869 = vmatprep.subr.mxu0 0.0
        %870 = vmatpush1.msra.mxu0 %v748
        %871 = vmatprep.subr.mxu0 0.0
        %872 = vmatpush1.msra.mxu0 %v747
        %873 = vmatprep.subr.mxu0 0.0
        %874 = vmatpush2.msra.mxu0 0.0
        %875 = vmatprep.subr.mxu0 0.0
        %876 = vmatpush2.msra.mxu0 0.0
        %877 = vmatprep.subr.mxu0 0.0
        %878 = vmatpush2.msra.mxu0 0.0
        %879 = vmatprep.subr.mxu0 0.0
        %880 = vmatpush2.msra.mxu0 0.0
        %881 = vmatprep.subr.mxu0 0.0
        %882 = vmatpush2.msra.mxu0 0.0
        %883 = vmatprep.subr.mxu0 0.0
        %884 = vmatpush2.msra.mxu0 0.0
        %885 = vmatprep.subr.mxu0 0.0
        %886 = vmatpush2.msra.mxu0 0.0
        %887 = vmatprep.subr.mxu0 0.0
        %888 = vmatpush2.msra.mxu0 0.0
        %889 = vmatprep.subr.mxu0 0.0
        %890 = vmatpush2.msra.mxu0 0.0
        %891 = vmatprep.subr.mxu0 0.0
        %892 = vmatpush2.msra.mxu0 0.0
        %893 = vmatprep.subr.mxu0 0.0
        %894 = vmatpush2.msra.mxu0 0.0
        %895 = vmatprep.subr.mxu0 0.0
        %896 = vmatpush2.msra.mxu0 0.0
        %897 = vmatprep.subr.mxu0 0.0
        %898 = vmatpush2.msra.mxu0 0.0
        %899 = vmatprep.subr.mxu0 0.0
        %900 = vmatpush2.msra.mxu0 0.0
        %901 = vmatprep.subr.mxu0 0.0
        %902 = vmatpush2.msra.mxu0 0.0
        %903 = vmatprep.subr.mxu0 0.0
        %904 = vmatpush2.msra.mxu0 0.0
        %905 = vmatprep.mubr.f32.mxu0 0.0
        %906 = vmatmul.mubr.f32.gmra.mxu0 %v839
        %v907 = vpop.f32.mrf.mxu0
        %v908 = vadd.f32 %v836, %v907
        %v909 = vpop.f32.mrf.mxu0
        %910 = vdwg.mxu0
        %s911 = scalar_lea.vmem %s482, 8 [#allocation2]
        %912 = vst.msk [vmem:[%s911] sm:$0xff] %vm719, %v908
        %s913 = sand.u32 %s328, 1
        %s914 = scalar_lea.sflag [#allocation3], %s913
        %s915 = sand.u32 %s328, 1
        %s916 = smul.addr %s915, 16
        %s917 = scalar_lea.vmem [#allocation2], %s916
        // Predicated region
        $region73: #{tpu_custom_call.1} parent=71 // pred_check
          %p918 = pneg %p338
        $region74: #{tpu_custom_call.1} parent=71 // pred_check_branch
          %920 = sbr.rel (%p918) target = $region76
        $region75: #{tpu_custom_call.1} parent=71 // pred_region
          %s921 = smul.u32 2, %s27
          %s923 = ssub.s32 256, 256
          %924 = vsyncadd %s914, %s923
          %s925 = smul.addr %s921, 128
          %s926 = scalar_lea.hbm %s13, %s925
          %s927 = sshll.u32 %s917, 4
          %s928 = int_to_ptr.vmem [resolvable:$true] %s927
          %933 = dma.vmem_to_hbm [thread:$0]  %s928, 256, %s926, %s914, 128, 128, 8
        $region76: #{tpu_custom_call.1} parent=71 // pred_fallthru
          _
      $region72: #{tpu_custom_call.1} parent=5 // pred_fallthru
        _
      %p934 = scmp.le.s32.totalorder 2, %s22
      // Predicated region
      $region77: #{tpu_custom_call.1} parent=5 // pred_check
        %p935 = pneg %p934
      $region78: #{tpu_custom_call.1} parent=5 // pred_check_branch
        %937 = sbr.rel (%p935) target = $region80
      $region79: #{tpu_custom_call.1} parent=5 // pred_region
        %s938 = ssub.s32 %s22, 2
        // Predicated region
        $region81: #{tpu_custom_call.1} parent=79 // pred_check
          %p939 = pneg %p344
        $region82: #{tpu_custom_call.1} parent=79 // pred_check_branch
          %941 = sbr.rel (%p939) target = $region84
        $region83: #{tpu_custom_call.1} parent=79 // pred_region
          %s942 = sand.u32 %s329, 1
          %s943 = scalar_lea.sflag [#allocation3], %s942
          %s944 = sand.u32 %s329, 1
          %s945 = smul.addr %s944, 16
          %s946 = scalar_lea.vmem [#allocation2], %s945
          %947 = dma.done %s943, 256
        $region84: #{tpu_custom_call.1} parent=79 // pred_fallthru
          _
      $region80: #{tpu_custom_call.1} parent=5 // pred_fallthru
        _
    $region6: #{tpu_custom_call.1} parent=1 // loop_footer
      %s26 = sadd.s32 1, %s22
    $region7: #{tpu_custom_call.1} parent=1 // loop_footer_branch
      %21 = sbr.rel target = $region3
    $region8: #{tpu_custom_call.1} parent=1 // loop_exit
      _
    %948 = vsyncpa [#allocation3], 1
    %s949 = scalar_lea.sflag [#allocation3], 1
    %950 = vsyncpa %s949, 1

</llo_original>
